<compile_context>
chip_gen: v7x
topology: tpu7x:2x2x1
jax: 0.10.0
libtpu: 0.0.40
codegen_flags: <defaults>
</compile_context>

<pallas_src>
import jax
import jax.numpy as jnp
from jax.experimental import pallas as pl
from jax.experimental.pallas import tpu as pltpu


def _byte2float_kernel(x_ref, o_ref):
    # uint8 -> float32, scale to [0, 1].
    o_ref[...] = x_ref[...].astype(jnp.float32) / jnp.float32(255.0)


# Lane widths to try (largest first): wider lane-dense output -> unmasked,
# back-to-back vst and bigger contiguous DMA descriptors.
_LANE_CHOICES = (2048, 1024, 512, 256, 128)

# Per-tile element cap.  Double-buffered footprint:
#   2 * (1 B in + 4 B out) * 4 Mi = 40 MiB  (<= 48 MiB scoped limit below,
#   <= 64 MiB physical VMEM on v7x; plenty of headroom on v5e/v6e 128 MiB).
_MAX_TILE_ELEMS = 1 << 22
_VMEM_LIMIT_BYTES = 48 << 20


def _pick_lane_width(n_elem):
    for cand in _LANE_CHOICES:
        if n_elem % cand == 0:
            return cand
    return None


def _convert_2d(x2d):
    """Run the Pallas kernel on a (rows, lane_w) uint8 view."""
    rows, lane_w = x2d.shape
    n_elem = rows * lane_w

    # Row tile: multiple of 32 (uint8 native sublane tile is (32, 128)).
    # VMEM cap on tile rows.
    cap_r = max(32, (_MAX_TILE_ELEMS // lane_w) // 32 * 32)
    # Keep at least ~4 row tiles so the grid still double-buffers (prefetch
    # tile i+1 / write back tile i-1 while converting tile i) for mid-size
    # inputs — never collapse to a single serialized block unless tiny.
    quarter_r = max(32, (rows // 4) // 32 * 32)
    tile_r = min(cap_r, quarter_r)
    if tile_r >= rows:
        tile_r = rows  # tiny input: single block, block dims == array dims
    grid = (pl.cdiv(rows, tile_r),)

    # NOTE: input pipeline depth pl.Buffered(3) is a 0-3% sweep candidate
    # (cheap 1 B/elem buffers); keep default double-buffering until an xprof
    # trace shows exposed input-DMA waits.
    return pl.pallas_call(
        _byte2float_kernel,
        out_shape=jax.ShapeDtypeStruct((rows, lane_w), jnp.float32),
        grid=grid,
        in_specs=[pl.BlockSpec((tile_r, lane_w), lambda i: (i, 0))],
        out_specs=pl.BlockSpec((tile_r, lane_w), lambda i: (i, 0)),
        compiler_params=pltpu.CompilerParams(
            dimension_semantics=("parallel",),
            vmem_limit_bytes=_VMEM_LIMIT_BYTES),
        cost_estimate=pl.CostEstimate(
            flops=n_elem, transcendentals=0, bytes_accessed=5 * n_elem),
    )(x2d)


def byte_pixel_to_float_pixel(x):
    """uint8 array (any shape, e.g. NCHW) -> float32 in [0, 1], same shape."""
    assert x.dtype == jnp.uint8
    orig_shape = x.shape
    n_elem = x.size
    if n_elem == 0:
        return jnp.zeros(orig_shape, jnp.float32)

    lane_w = _pick_lane_width(n_elem)
    if lane_w is not None:
        # Free reshape to a lane-dense 2D view: no pad, no post-slice copies.
        out2d = _convert_2d(x.reshape(n_elem // lane_w, lane_w))
        return out2d.reshape(orig_shape)

    # Ragged element count (rare for NCHW pixels): stream the 128-aligned
    # prefix through the kernel at the 5 B/elem floor and convert the
    # <=127-element tail with plain jnp (negligible traffic).  Only the final
    # concat re-touches the output, instead of the old pad-whole-input +
    # slice-whole-output path.
    flat = x.reshape(-1)
    n_tail = n_elem % 128
    n_main = n_elem - n_tail
    if n_main == 0:
        return (flat.astype(jnp.float32) / jnp.float32(255.0)).reshape(orig_shape)
    lane_w = _pick_lane_width(n_main) or 128
    head_out = _convert_2d(flat[:n_main].reshape(n_main // lane_w, lane_w))
    tail_out = flat[n_main:].astype(jnp.float32) / jnp.float32(255.0)
    return jnp.concatenate([head_out.reshape(-1), tail_out]).reshape(orig_shape)


if __name__ == "__main__":
    key = jax.random.PRNGKey(0)

    # NCHW uint8 pixels, small shape: batch=2, channels=4, spatial=16x16.
    x = jax.random.randint(key, (2, 4, 16, 16), 0, 256, dtype=jnp.int32).astype(
        jnp.uint8
    )
    out = jax.block_until_ready(byte_pixel_to_float_pixel(x))
    ref = x.astype(jnp.float32) / 255.0
    assert out.shape == ref.shape and out.dtype == ref.dtype
    assert jnp.allclose(out, ref, atol=1e-7), "mismatch vs reference"

    # Exercise the ragged (non-multiple-of-128) path as well.
    key2 = jax.random.PRNGKey(1)
    xr = jax.random.randint(key2, (3, 3, 5, 7), 0, 256, dtype=jnp.int32).astype(
        jnp.uint8
    )
    out_r = jax.block_until_ready(byte_pixel_to_float_pixel(xr))
    ref_r = xr.astype(jnp.float32) / 255.0
    assert out_r.shape == ref_r.shape and out_r.dtype == ref_r.dtype
    assert jnp.allclose(out_r, ref_r, atol=1e-7), "mismatch vs reference (ragged)"

    print("KERNEL_OK")
</pallas_src>

<mosaic_0001>
module attributes {stable_mosaic.version = 11 : i64} {
  func.func @_byte2float_kernel(%arg0: i32, %arg1: memref<1x2048xi8, #tpu.memory_space<vmem>>, %arg2: memref<1x2048xf32, #tpu.memory_space<vmem>>) attributes {dimension_semantics = [#tpu.dimension_semantics<parallel>], iteration_bounds = array<i64: 1>, scalar_prefetch = 0 : i64, scratch_operands = 0 : i64, tpu.core_type = #tpu.core_type<tc>, window_params = [{transform_indices = @transform_0, window_bounds = array<i64: 1, 2048>}, {transform_indices = @transform_1, window_bounds = array<i64: 1, 2048>}]} {
    %c0 = arith.constant 0 : index
    %c0_0 = arith.constant 0 : index
    %0 = vector.load %arg1[%c0, %c0_0] : memref<1x2048xi8, #tpu.memory_space<vmem>>, vector<1x2048xi8>
    %1 = arith.uitofp %0 : vector<1x2048xi8> to vector<1x2048xf32>
    %cst = arith.constant 2.550000e+02 : f32
    %2 = vector.broadcast %cst : f32 to vector<1x2048xf32>
    %3 = arith.divf %1, %2 : vector<1x2048xf32>
    %c0_1 = arith.constant 0 : index
    %c0_2 = arith.constant 0 : index
    %4 = vector.load %arg2[%c0_1, %c0_2] : memref<1x2048xf32, #tpu.memory_space<vmem>>, vector<1x2048xf32>
    tpu.vector_store %arg2[%c0_1, %c0_2], %3 {strides = array<i32>} : memref<1x2048xf32, #tpu.memory_space<vmem>>, vector<1x2048xf32>,
    return
  }
  func.func @transform_0(%arg0: i32) -> (i32, i32) {
    %c0_i32 = arith.constant 0 : i32
    %c0_i32_0 = arith.constant 0 : i32
    return %arg0, %c0_i32 : i32, i32
  }
  func.func @transform_1(%arg0: i32) -> (i32, i32) {
    %c0_i32 = arith.constant 0 : i32
    %c0_i32_0 = arith.constant 0 : i32
    return %arg0, %c0_i32 : i32, i32
  }
}

</mosaic_0001>

<llo_original>
// kernel: tpu_custom_call.1
$region0: #{tpu_custom_call.1}
  #allocation0 [shape = 'u32[]', space=smem, size = 0x4, offset = 0x4, fixed_abs, tag = 'smem constant byte address 0x4 - core index']
  #allocation1 [shape = 'u32[144,128]{1,0:T(1,128)}', space=vmem, size = 0x12000, scoped, tag = 'internal scratch']
  %s0 = inlined_call_operand.hbm [shape: u8[1,2048], index: 0, kind: input, shape index: {}]
  %s1 = inlined_call_operand.hbm [shape: f32[1,2048], index: 1, kind: output, shape index: {}]
  %s2 = sld [smem:[#allocation0]]
  $region18: #{tpu_custom_call.1} parent=0
    _
  %s4 = ssub.s32 1, %s2
  %s5 = scalar_select 0, %s4, %s2
  $region1: #{tpu_custom_call.1} parent=0
    #allocation2 [shape = 'u8[8192]{0}', space=vmem, size = 0x2000, scoped, tag = 'input window, operand 0, single buffered']
    #allocation3 [shape = 's32[1]{0}', space=sflag, size = 0x4, scoped, tag = 'scoped memory for tpu_custom_call.1']
    #allocation4 [shape = 's32[1]{0}', space=sflag, size = 0x4, scoped, tag = 'scoped memory for tpu_custom_call.1']
    #allocation5 [shape = 'u8[8192]{0}', space=vmem, size = 0x2000, scoped, tag = 'output window, operand 0, single buffered']
    %6 = vsyncpa [#allocation3], 0
    %7 = vsyncpa [#allocation4], 0
    // Predicated region
    $region2: #{tpu_custom_call.1} parent=1 // pred_check
      _
    $region3: #{tpu_custom_call.1} parent=1 // pred_check_branch
      %9 = sbr.rel (0) target = $region5
    $region4: #{tpu_custom_call.1} parent=1 // pred_region
      %s11 = ssub.s32 256, 256
      %12 = vsyncadd [#allocation3], %s11
      %s14 = sshll.u32 [#allocation2], 4
      %s15 = int_to_ptr.vmem [resolvable:$true] %s14
      %17 = dma.hbm_to_vmem [thread:$0]  %s0, 256, %s15, [#allocation3]
    $region5: #{tpu_custom_call.1} parent=1 // pred_fallthru
      _
    // Predicated region
    $region6: #{tpu_custom_call.1} parent=1 // pred_check
      _
    $region7: #{tpu_custom_call.1} parent=1 // pred_check_branch
      %19 = sbr.rel (0) target = $region9
    $region8: #{tpu_custom_call.1} parent=1 // pred_region
      %20 = dma.done [#allocation3], 256
    $region9: #{tpu_custom_call.1} parent=1 // pred_fallthru
      _
    %v21 = vld [vmem:[#allocation2] sm:$0xff]
    %v22 = vld [vmem:[#allocation2 + $0x8] sm:$0xff]
    %v23 = vunpack.c.0.s8 %v21
    %v24 = vunpack.c.1.s8 %v21
    %v25 = vunpack.c.2.s8 %v21
    %v26 = vunpack.c.3.s8 %v21
    %v27 = vunpack.c.0.s8 %v22
    %v28 = vunpack.c.1.s8 %v22
    %v29 = vunpack.c.2.s8 %v22
    %v30 = vunpack.c.3.s8 %v22
    %v31 = vand.u32 %v23, 255
    %v32 = vand.u32 %v24, 255
    %v33 = vand.u32 %v25, 255
    %v34 = vand.u32 %v26, 255
    %v35 = vand.u32 %v27, 255
    %v36 = vand.u32 %v28, 255
    %v37 = vand.u32 %v29, 255
    %v38 = vand.u32 %v30, 255
    %v39 = vcvt.s32.f32 %v31
    %v40 = vcvt.s32.f32 %v32
    %v41 = vcvt.s32.f32 %v33
    %v42 = vcvt.s32.f32 %v34
    %v43 = vcvt.s32.f32 %v35
    %v44 = vcvt.s32.f32 %v36
    %v45 = vcvt.s32.f32 %v37
    %v46 = vcvt.s32.f32 %v38
    %v47 = vrcp.pop 255.0
    %v48 = vmul.f32 %v39, %v47
    %v49 = vmul.f32 %v40, %v47
    %v50 = vmul.f32 %v41, %v47
    %v51 = vmul.f32 %v42, %v47
    %v52 = vmul.f32 %v43, %v47
    %v53 = vmul.f32 %v44, %v47
    %v54 = vmul.f32 %v45, %v47
    %v55 = vmul.f32 %v46, %v47
    %v65 = vunpack.c.l.s4 1966171168
    %v66 = vunpack.c.0.s8 %v65
    %v67 = vlaneseq
    %v68 = vshrl.u32 %v67, 7
    %v69 = vsub.s32 %v66, %v68
    %v70 = vrot.slane %v48, %v69
    %v72 = vunpack.c.l.s4 1966171168
    %v73 = vunpack.c.0.s8 %v72
    %v74 = vlaneseq
    %v75 = vshrl.u32 %v74, 7
    %v76 = vsub.s32 %v73, %v75
    %v77 = vrot.slane %v49, %v76
    %v79 = vunpack.c.l.s4 1966171168
    %v80 = vunpack.c.0.s8 %v79
    %v81 = vlaneseq
    %v82 = vshrl.u32 %v81, 7
    %v83 = vsub.s32 %v80, %v82
    %v84 = vrot.slane %v50, %v83
    %v86 = vunpack.c.l.s4 1966171168
    %v87 = vunpack.c.0.s8 %v86
    %v88 = vlaneseq
    %v89 = vshrl.u32 %v88, 7
    %v90 = vsub.s32 %v87, %v89
    %v91 = vrot.slane %v51, %v90
    %v92 = vcombine.low %v70, %v77
    %v93 = vcombine.low %v84, %v91
    %v95 = vunpack.c.l.s4 1966171168
    %v96 = vunpack.c.0.s8 %v95
    %v97 = vlaneseq
    %v98 = vshrl.u32 %v97, 7
    %v99 = vsub.s32 %v96, %v98
    %v100 = vrot.slane %v92, %v99
    %v102 = vunpack.c.l.s4 1966171168
    %v103 = vunpack.c.0.s8 %v102
    %v104 = vlaneseq
    %v105 = vshrl.u32 %v104, 7
    %v106 = vsub.s32 %v103, %v105
    %v107 = vrot.slane %v93, %v106
    %v108 = vcombine.low %v100, %v107
    %v110 = vunpack.c.l.s4 1966171168
    %v111 = vunpack.c.0.s8 %v110
    %v112 = vlaneseq
    %v113 = vshrl.u32 %v112, 7
    %v114 = vsub.s32 %v111, %v113
    %v115 = vrot.slane %v52, %v114
    %v117 = vunpack.c.l.s4 1966171168
    %v118 = vunpack.c.0.s8 %v117
    %v119 = vlaneseq
    %v120 = vshrl.u32 %v119, 7
    %v121 = vsub.s32 %v118, %v120
    %v122 = vrot.slane %v53, %v121
    %v124 = vunpack.c.l.s4 1966171168
    %v125 = vunpack.c.0.s8 %v124
    %v126 = vlaneseq
    %v127 = vshrl.u32 %v126, 7
    %v128 = vsub.s32 %v125, %v127
    %v129 = vrot.slane %v54, %v128
    %v131 = vunpack.c.l.s4 1966171168
    %v132 = vunpack.c.0.s8 %v131
    %v133 = vlaneseq
    %v134 = vshrl.u32 %v133, 7
    %v135 = vsub.s32 %v132, %v134
    %v136 = vrot.slane %v55, %v135
    %v137 = vcombine.low %v115, %v122
    %v138 = vcombine.low %v129, %v136
    %v140 = vunpack.c.l.s4 1966171168
    %v141 = vunpack.c.0.s8 %v140
    %v142 = vlaneseq
    %v143 = vshrl.u32 %v142, 7
    %v144 = vsub.s32 %v141, %v143
    %v145 = vrot.slane %v137, %v144
    %v147 = vunpack.c.l.s4 1966171168
    %v148 = vunpack.c.0.s8 %v147
    %v149 = vlaneseq
    %v150 = vshrl.u32 %v149, 7
    %v151 = vsub.s32 %v148, %v150
    %v152 = vrot.slane %v138, %v151
    %v153 = vcombine.low %v145, %v152
    %156 = vst [vmem:[#allocation5] sm:$0xff] %v108
    %157 = vst [vmem:[#allocation5 + $0x8] sm:$0xff] %v153
    // Predicated region
    $region10: #{tpu_custom_call.1} parent=1 // pred_check
      _
    $region11: #{tpu_custom_call.1} parent=1 // pred_check_branch
      %159 = sbr.rel (0) target = $region13
    $region12: #{tpu_custom_call.1} parent=1 // pred_region
      %s161 = ssub.s32 256, 256
      %162 = vsyncadd [#allocation4], %s161
      %s164 = sshll.u32 [#allocation5], 4
      %s165 = int_to_ptr.vmem [resolvable:$true] %s164
      %167 = dma.vmem_to_hbm [thread:$0]  %s165, 256, %s1, [#allocation4]
    $region13: #{tpu_custom_call.1} parent=1 // pred_fallthru
      _
    // Predicated region
    $region14: #{tpu_custom_call.1} parent=1 // pred_check
      _
    $region15: #{tpu_custom_call.1} parent=1 // pred_check_branch
      %169 = sbr.rel (0) target = $region17
    $region16: #{tpu_custom_call.1} parent=1 // pred_region
      %170 = dma.done [#allocation4], 256
    $region17: #{tpu_custom_call.1} parent=1 // pred_fallthru
      _
    %171 = vsyncpa [#allocation3], 1
    %172 = vsyncpa [#allocation4], 1

</llo_original>
